<compile_context>
chip_gen: v7x
topology: tpu7x:2x2x1
jax: 0.10.0
libtpu: 0.0.40
codegen_flags: <defaults>
</compile_context>

<pallas_src>
import functools

import jax
import jax.numpy as jnp
from jax.experimental import pallas as pl
from jax.experimental.pallas import tpu as pltpu

KSIZE = 31                            # depthwise conv kernel size (torchaudio)
_HALO = (KSIZE - 1) // 2              # 15
_PAD_FRONT = ((_HALO + 7) // 8) * 8   # 16: sublane-aligned offset for the GLU store
_ROW_TILE = 512                       # row tile for projection / FFN kernels
_NEG_INF = -1e9


# ---------------------------------------------------------------------------
# small helpers
# ---------------------------------------------------------------------------
def _bf16(v):
    return v.astype(jnp.bfloat16)


def _ln_f32(x, g, b, eps=1e-5):
    mu = jnp.mean(x, axis=-1, keepdims=True)
    var = jnp.mean(jnp.square(x - mu), axis=-1, keepdims=True)
    return (x - mu) * jax.lax.rsqrt(var + eps) * g + b


def _vmem_limit_bytes():
    """Per-generation scoped-VMEM limit (review: never request all of v7x's 64 MiB)."""
    try:
        cap = int(getattr(pltpu.get_tpu_info(), "vmem_capacity_bytes",
                          128 * 1024 * 1024))
    except Exception:  # pragma: no cover - info query unavailable
        cap = 128 * 1024 * 1024
    if cap >= 128 * 1024 * 1024:          # v5e / v6e
        return 96 * 1024 * 1024
    return max(cap - 16 * 1024 * 1024, 32 * 1024 * 1024)   # v7x: leave headroom


_VMEM_LIMIT = None


def _cp(dim_sem):
    global _VMEM_LIMIT
    if _VMEM_LIMIT is None:
        _VMEM_LIMIT = _vmem_limit_bytes()
    return pltpu.CompilerParams(dimension_semantics=dim_sem,
                                vmem_limit_bytes=_VMEM_LIMIT)


# -- single-buffered resident weight blocks (probed once; graceful fallback) --
_BUFFERED_OK = None


def _probe_copy_kernel(w_ref, o_ref):
    o_ref[...] = w_ref[...]


def _single_buffer_supported():
    global _BUFFERED_OK
    if _BUFFERED_OK is None:
        ok = False
        if hasattr(pl, "Buffered"):
            try:
                spec = pl.BlockSpec((8, 128), lambda i: (0, 0),
                                    pipeline_mode=pl.Buffered(1))
                fn = pl.pallas_call(
                    _probe_copy_kernel,
                    grid=(1,),
                    in_specs=[spec],
                    out_specs=pl.BlockSpec((8, 128), lambda i: (i, 0)),
                    out_shape=jax.ShapeDtypeStruct((8, 128), jnp.float32),
                )
                jax.block_until_ready(fn(jnp.zeros((8, 128), jnp.float32)))
                ok = True
            except Exception:
                ok = False
        _BUFFERED_OK = ok
    return _BUFFERED_OK


def _rep_spec(shape):
    """Weight / bias block resident across the whole grid (constant index_map),
    single-buffered when the jax build supports pipeline_mode=pl.Buffered(1)."""
    nd = len(shape)
    idx = lambda *_: (0,) * nd
    if _single_buffer_supported():
        return pl.BlockSpec(shape, idx, pipeline_mode=pl.Buffered(1))
    return pl.BlockSpec(shape, idx)


def _row_grid(rows):
    tile = rows if rows <= _ROW_TILE else _ROW_TILE
    padded = -(-rows // tile) * tile
    return tile, padded


def _q_tile(T):
    for t in (256, 128):
        if T % t == 0 and T > t:
            return t
    return T


# ---------------------------------------------------------------------------
# Kernels (weights arrive pre-cast to bf16; accumulation in f32 on the MXU)
# ---------------------------------------------------------------------------
def _proj_kernel(x_ref, w_ref, b_ref, o_ref):
    y = jnp.dot(_bf16(x_ref[...]), w_ref[...], preferred_element_type=jnp.float32)
    y = y + b_ref[...].astype(jnp.float32)
    o_ref[...] = y.astype(o_ref.dtype)


def _ffn_kernel(x_ref, g_ref, b_ref, w1_ref, b1_ref, w2_ref, b2_ref, *rest,
                final_ln):
    # Fused: LayerNorm -> W1 -> SiLU -> W2 -> x + 0.5*y  (-> optional final LayerNorm)
    if final_ln:
        fg_ref, fb_ref, o_ref = rest
    else:
        (o_ref,) = rest
    x = x_ref[...].astype(jnp.float32)
    y = _ln_f32(x, g_ref[...].astype(jnp.float32), b_ref[...].astype(jnp.float32))
    h = jnp.dot(_bf16(y), w1_ref[...], preferred_element_type=jnp.float32)
    h = h + b1_ref[...].astype(jnp.float32)
    h = h * jax.nn.sigmoid(h)                               # SiLU (f32, VPU/EUP)
    z = jnp.dot(_bf16(h), w2_ref[...], preferred_element_type=jnp.float32)
    z = z + b2_ref[...].astype(jnp.float32)
    out = x + 0.5 * z
    if final_ln:
        out = _ln_f32(out, fg_ref[...].astype(jnp.float32),
                      fb_ref[...].astype(jnp.float32))
    o_ref[...] = out.astype(o_ref.dtype)


def _mhsa_kernel(lens_ref, xq_ref, xf_ref, g_ref, b_ref, wq_ref, bq_ref,
                 wkv_ref, bkv_ref, wo_ref, bo_ref, o_ref, kv_scr, attn_scr,
                 *, n_head, scale):
    # Fused: LayerNorm -> Q proj (per Q tile) / KV proj (once per batch element,
    # cached in VMEM scratch) -> masked softmax attention per head (scratch-sliced
    # output, no concat) -> Wo -> residual.
    bidx = pl.program_id(0)
    qi = pl.program_id(1)
    tq, D = xq_ref.shape[1], xq_ref.shape[2]
    T = xf_ref.shape[1]
    dh = D // n_head

    g = g_ref[...].astype(jnp.float32)
    beta = b_ref[...].astype(jnp.float32)

    @pl.when(qi == 0)                                       # K/V for the whole sequence
    def _():
        xf = xf_ref[0].astype(jnp.float32)                  # (T, D)
        yf = _ln_f32(xf, g, beta)
        kv = jnp.dot(_bf16(yf), wkv_ref[...], preferred_element_type=jnp.float32)
        kv = kv + bkv_ref[...].astype(jnp.float32)          # (T, 2D)
        kv_scr[...] = kv.astype(jnp.bfloat16)

    xq = xq_ref[0].astype(jnp.float32)                      # (tq, D)
    yq = _ln_f32(xq, g, beta)
    q = jnp.dot(_bf16(yq), wq_ref[...], preferred_element_type=jnp.float32)
    q = q + bq_ref[...].astype(jnp.float32)                 # (tq, D)

    # key-padding additive bias from lengths (SMEM scalar prefetch)
    valid_len = lens_ref[bidx]
    key_idx = jax.lax.broadcasted_iota(jnp.int32, (1, T), 1)
    bias = jnp.where(key_idx >= valid_len, jnp.float32(_NEG_INF), jnp.float32(0.0))

    for h in range(n_head):                                 # static unroll over heads
        qh = _bf16(q[:, h * dh:(h + 1) * dh])
        kh = kv_scr[:, h * dh:(h + 1) * dh]                 # bf16 (T, dh)
        vh = kv_scr[:, D + h * dh:D + (h + 1) * dh]
        s = jnp.einsum("qd,kd->qk", qh, kh,
                       preferred_element_type=jnp.float32) * scale   # (tq, T)
        s = s + bias
        m = jnp.max(s, axis=-1, keepdims=True)
        p = jnp.exp(s - m)
        l = jnp.sum(p, axis=-1, keepdims=True)
        oh = jnp.dot(_bf16(p), vh, preferred_element_type=jnp.float32)
        attn_scr[:, h * dh:(h + 1) * dh] = oh * pl.reciprocal(l, approx=True)

    proj = jnp.dot(_bf16(attn_scr[...]), wo_ref[...],
                   preferred_element_type=jnp.float32)
    proj = proj + bo_ref[...].astype(jnp.float32)
    o_ref[0] = (xq + proj).astype(o_ref.dtype)


def _conv_kernel(x_ref, g_ref, b_ref, w1a_ref, b1a_ref, w1b_ref, b1b_ref,
                 dw_ref, sc_ref, sh_ref, w2_ref, b2_ref, o_ref, pad_ref, *, ksize):
    # Fused: LayerNorm -> pointwise conv1 (GLU via two matmuls) -> depthwise conv
    #        -> folded BatchNorm scale/shift -> SiLU -> pointwise conv2 -> residual.
    x = x_ref[0].astype(jnp.float32)                        # (T, D)
    T, D = x.shape
    halo = (ksize - 1) // 2
    front = ((halo + 7) // 8) * 8                           # sublane-aligned offset

    y = _ln_f32(x, g_ref[...].astype(jnp.float32), b_ref[...].astype(jnp.float32))
    yb = _bf16(y)
    a = jnp.dot(yb, w1a_ref[...], preferred_element_type=jnp.float32)
    a = a + b1a_ref[...].astype(jnp.float32)
    gate = jnp.dot(yb, w1b_ref[...], preferred_element_type=jnp.float32)
    gate = gate + b1b_ref[...].astype(jnp.float32)
    glu = a * jax.nn.sigmoid(gate)                          # (T, D)

    # zero ONLY the halo regions (review: no full-buffer zero pass); main body is the
    # GLU result stored at a sublane-aligned offset (unmasked stores).
    pad_ref[:front, :] = jnp.zeros((front, D), jnp.float32)
    pad_ref[front + T:, :] = jnp.zeros((halo, D), jnp.float32)
    pad_ref[front:front + T, :] = glu

    dw = dw_ref[...].astype(jnp.float32)                    # (ksize, D) taps
    off = front - halo
    acc = jnp.zeros((T, D), jnp.float32)
    for k in range(ksize):                                  # static unroll over taps
        acc = acc + pad_ref[off + k:off + k + T, :] * dw[k:k + 1, :]

    # BatchNorm1d (eval) folded into scale/shift on the host; then SiLU.
    z = acc * sc_ref[...].astype(jnp.float32) + sh_ref[...].astype(jnp.float32)
    z = z * jax.nn.sigmoid(z)

    out = jnp.dot(_bf16(z), w2_ref[...], preferred_element_type=jnp.float32)
    out = out + b2_ref[...].astype(jnp.float32)
    o_ref[0] = (x + out).astype(o_ref.dtype)


# ---------------------------------------------------------------------------
# Wrappers (reshape / padding glue only; all compute is inside the kernels)
# ---------------------------------------------------------------------------
def projection(x, w, b, out_dtype):
    lead, K = x.shape[:-1], x.shape[-1]
    N = w.shape[-1]
    x2 = x.reshape(-1, K)
    rows = x2.shape[0]
    tile, padded = _row_grid(rows)
    if padded != rows:
        x2 = jnp.pad(x2, ((0, padded - rows), (0, 0)))
    out = pl.pallas_call(
        _proj_kernel,
        grid=(padded // tile,),
        in_specs=[pl.BlockSpec((tile, K), lambda i: (i, 0)),
                  _rep_spec((K, N)),
                  _rep_spec((1, N))],
        out_specs=pl.BlockSpec((tile, N), lambda i: (i, 0)),
        out_shape=jax.ShapeDtypeStruct((padded, N), out_dtype),
        compiler_params=_cp(("parallel",)),
    )(x2, w, b)
    return out[:rows].reshape(*lead, N)


def ffn_module(x, g, b, w1, b1, w2, b2, final_g=None, final_b=None):
    lead, D = x.shape[:-1], x.shape[-1]
    F = w1.shape[-1]
    x2 = x.reshape(-1, D)
    rows = x2.shape[0]
    tile, padded = _row_grid(rows)
    if padded != rows:
        x2 = jnp.pad(x2, ((0, padded - rows), (0, 0)))
    final_ln = final_g is not None

    args = [x2, g, b, w1, b1, w2, b2]
    in_specs = [pl.BlockSpec((tile, D), lambda i: (i, 0)),
                _rep_spec((1, D)), _rep_spec((1, D)),
                _rep_spec((D, F)), _rep_spec((1, F)),
                _rep_spec((F, D)), _rep_spec((1, D))]
    if final_ln:
        args += [final_g, final_b]
        in_specs += [_rep_spec((1, D)), _rep_spec((1, D))]

    out = pl.pallas_call(
        functools.partial(_ffn_kernel, final_ln=final_ln),
        grid=(padded // tile,),
        in_specs=in_specs,
        out_specs=pl.BlockSpec((tile, D), lambda i: (i, 0)),
        out_shape=jax.ShapeDtypeStruct((padded, D), x.dtype),
        compiler_params=_cp(("parallel",)),
    )(*args)
    return out[:rows].reshape(*lead, D)


def mhsa_module(x, p, lengths, n_head):
    B, T, D = x.shape
    scale = 1.0 / ((D // n_head) ** 0.5)
    tq = _q_tile(T)
    nq = T // tq
    grid_spec = pltpu.PrefetchScalarGridSpec(
        num_scalar_prefetch=1,
        grid=(B, nq),
        in_specs=[pl.BlockSpec((1, tq, D), lambda bi, qi, lens: (bi, qi, 0)),
                  pl.BlockSpec((1, T, D), lambda bi, qi, lens: (bi, 0, 0)),
                  _rep_spec((1, D)), _rep_spec((1, D)),
                  _rep_spec((D, D)), _rep_spec((1, D)),
                  _rep_spec((D, 2 * D)), _rep_spec((1, 2 * D)),
                  _rep_spec((D, D)), _rep_spec((1, D))],
        out_specs=pl.BlockSpec((1, tq, D), lambda bi, qi, lens: (bi, qi, 0)),
        scratch_shapes=[pltpu.VMEM((T, 2 * D), jnp.bfloat16),   # cached K|V
                        pltpu.VMEM((tq, D), jnp.float32)],      # per-head concat
    )
    # q axis is "arbitrary" because the K/V scratch computed at qi==0 carries across it.
    return pl.pallas_call(
        functools.partial(_mhsa_kernel, n_head=n_head, scale=scale),
        grid_spec=grid_spec,
        out_shape=jax.ShapeDtypeStruct((B, T, D), x.dtype),
        compiler_params=_cp(("parallel", "arbitrary")),
    )(lengths, x, x,
      p["attn_ln_g"], p["attn_ln_b"],
      p["wq"], p["bq"], p["wkv"], p["bkv"], p["wo"], p["bo"])


def conv_module(x, p):
    B, T, D = x.shape
    pad_rows = _PAD_FRONT + T + _HALO
    args = [x, p["conv_ln_g"], p["conv_ln_b"],
            p["pw1a_w"], p["pw1a_b"], p["pw1b_w"], p["pw1b_b"],
            p["dw_w"], p["dw_scale"], p["dw_shift"],
            p["pw2_w"], p["pw2_b"]]
    in_specs = [pl.BlockSpec((1, T, D), lambda bi: (bi, 0, 0)),
                _rep_spec((1, D)), _rep_spec((1, D)),
                _rep_spec((D, D)), _rep_spec((1, D)),
                _rep_spec((D, D)), _rep_spec((1, D)),
                _rep_spec((KSIZE, D)), _rep_spec((1, D)), _rep_spec((1, D)),
                _rep_spec((D, D)), _rep_spec((1, D))]
    return pl.pallas_call(
        functools.partial(_conv_kernel, ksize=KSIZE),
        grid=(B,),
        in_specs=in_specs,
        out_specs=pl.BlockSpec((1, T, D), lambda bi: (bi, 0, 0)),
        out_shape=jax.ShapeDtypeStruct((B, T, D), x.dtype),
        scratch_shapes=[pltpu.VMEM((pad_rows, D), jnp.float32)],
        compiler_params=_cp(("parallel",)),
    )(*args)


def conformer_layer(x, p, lengths, n_head):
    # FFN 1 (half-step residual)
    x = ffn_module(x, p["ffn1_ln_g"], p["ffn1_ln_b"],
                   p["ffn1_w1"], p["ffn1_b1"], p["ffn1_w2"], p["ffn1_b2"])
    # MHSA with key-padding mask
    x = mhsa_module(x, p, lengths, n_head)
    # Convolution module
    x = conv_module(x, p)
    # FFN 2 (half-step residual) with the block's final LayerNorm fused in
    x = ffn_module(x, p["ffn2_ln_g"], p["ffn2_ln_b"],
                   p["ffn2_w1"], p["ffn2_b1"], p["ffn2_w2"], p["ffn2_b2"],
                   final_g=p["final_ln_g"], final_b=p["final_ln_b"])
    return x


def visual_conformer_encoder(prepared, video_inputs, video_input_lengths, n_head):
    # pass_visual_frontend=True  ->  ResNet frontend skipped, inputs are features.
    # Inter-module activations are carried in bf16; f32 restored at the output.
    x = projection(video_inputs, prepared["proj_w"], prepared["proj_b"],
                   out_dtype=jnp.bfloat16)
    lengths = video_input_lengths.astype(jnp.int32)
    for layer in prepared["layers"]:
        x = conformer_layer(x, layer, lengths, n_head)
    return x.astype(jnp.float32), video_input_lengths


# ---------------------------------------------------------------------------
# One-time host-side weight preparation (fusion, BN folding, bf16 cast) — hoisted
# out of the forward pass per review.
# ---------------------------------------------------------------------------
def prepare_params(params):
    eps = 1e-5

    def r(v):                       # (N,) -> (1, N) f32 row vector
        return v.reshape(1, -1).astype(jnp.float32)

    prepared = {"proj_w": _bf16(params["proj_w"]),
                "proj_b": r(params["proj_b"]),
                "layers": []}
    for p in params["layers"]:
        d_model = p["wq"].shape[0]
        bn_scale = p["bn_g"] / jnp.sqrt(p["bn_var"] + eps)
        bn_shift = p["bn_b"] + (p["dw_b"] - p["bn_m"]) * bn_scale
        q = {
            "ffn1_ln_g": r(p["ffn1_ln_g"]), "ffn1_ln_b": r(p["ffn1_ln_b"]),
            "ffn1_w1": _bf16(p["ffn1_w1"]), "ffn1_b1": r(p["ffn1_b1"]),
            "ffn1_w2": _bf16(p["ffn1_w2"]), "ffn1_b2": r(p["ffn1_b2"]),
            "attn_ln_g": r(p["attn_ln_g"]), "attn_ln_b": r(p["attn_ln_b"]),
            "wq": _bf16(p["wq"]), "bq": r(p["bq"]),
            "wkv": _bf16(jnp.concatenate([p["wk"], p["wv"]], axis=1)),
            "bkv": r(jnp.concatenate([p["bk"], p["bv"]], axis=0)),
            "wo": _bf16(p["wo"]), "bo": r(p["bo"]),
            "conv_ln_g": r(p["conv_ln_g"]), "conv_ln_b": r(p["conv_ln_b"]),
            "pw1a_w": _bf16(p["pw1_w"][:, :d_model]), "pw1a_b": r(p["pw1_b"][:d_model]),
            "pw1b_w": _bf16(p["pw1_w"][:, d_model:]), "pw1b_b": r(p["pw1_b"][d_model:]),
            "dw_w": p["dw_w"].astype(jnp.float32),       # tiny; stays f32
            "dw_scale": r(bn_scale), "dw_shift": r(bn_shift),
            "pw2_w": _bf16(p["pw2_w"]), "pw2_b": r(p["pw2_b"]),
            "ffn2_ln_g": r(p["ffn2_ln_g"]), "ffn2_ln_b": r(p["ffn2_ln_b"]),
            "ffn2_w1": _bf16(p["ffn2_w1"]), "ffn2_b1": r(p["ffn2_b1"]),
            "ffn2_w2": _bf16(p["ffn2_w2"]), "ffn2_b2": r(p["ffn2_b2"]),
            "final_ln_g": r(p["final_ln_g"]), "final_ln_b": r(p["final_ln_b"]),
        }
        prepared["layers"].append(q)
    return jax.tree_util.tree_map(lambda a: jax.device_put(a), prepared)


# ---------------------------------------------------------------------------
# Deterministic parameter construction (shapes from the module's __init__)
# ---------------------------------------------------------------------------
def init_params(key, front_dim, d_model, n_head, ff_dim, n_layer):
    del n_head
    keys = jax.random.split(key, 1 + n_layer)

    def dense(k, fi, fo):
        return (jax.random.normal(k, (fi, fo), jnp.float32) * 0.02).astype(jnp.float32)

    def zeros(n):
        return jnp.zeros((n,), jnp.float32)

    def ones(n):
        return jnp.ones((n,), jnp.float32)

    params = {"proj_w": dense(keys[0], front_dim, d_model),
              "proj_b": zeros(d_model),
              "layers": []}
    for li in range(n_layer):
        lk = jax.random.split(keys[1 + li], 11)
        layer = {
            "ffn1_ln_g": ones(d_model), "ffn1_ln_b": zeros(d_model),
            "ffn1_w1": dense(lk[0], d_model, ff_dim), "ffn1_b1": zeros(ff_dim),
            "ffn1_w2": dense(lk[1], ff_dim, d_model), "ffn1_b2": zeros(d_model),
            "attn_ln_g": ones(d_model), "attn_ln_b": zeros(d_model),
            "wq": dense(lk[2], d_model, d_model), "bq": zeros(d_model),
            "wk": dense(lk[3], d_model, d_model), "bk": zeros(d_model),
            "wv": dense(lk[4], d_model, d_model), "bv": zeros(d_model),
            "wo": dense(lk[5], d_model, d_model), "bo": zeros(d_model),
            "conv_ln_g": ones(d_model), "conv_ln_b": zeros(d_model),
            "pw1_w": dense(lk[6], d_model, 2 * d_model), "pw1_b": zeros(2 * d_model),
            "dw_w": (jax.random.normal(lk[7], (KSIZE, d_model), jnp.float32) * 0.02),
            "dw_b": zeros(d_model),
            "bn_g": ones(d_model), "bn_b": zeros(d_model),
            "bn_m": zeros(d_model), "bn_var": ones(d_model),   # eval running stats
            "pw2_w": dense(lk[8], d_model, d_model), "pw2_b": zeros(d_model),
            "ffn2_ln_g": ones(d_model), "ffn2_ln_b": zeros(d_model),
            "ffn2_w1": dense(lk[9], d_model, ff_dim), "ffn2_b1": zeros(ff_dim),
            "ffn2_w2": dense(lk[10], ff_dim, d_model), "ffn2_b2": zeros(d_model),
            "final_ln_g": ones(d_model), "final_ln_b": zeros(d_model),
        }
        params["layers"].append(layer)
    return params


# ---------------------------------------------------------------------------
if __name__ == "__main__":
    B, T = 2, 8
    front_dim, d_model, n_head, ff_dim, n_layer = 32, 32, 4, 64, 2

    key = jax.random.PRNGKey(0)
    k_inp, k_par = jax.random.split(key)

    # video_inputs are pre-extracted frontend features: (B, T, front_dim)
    video_inputs = jax.random.normal(k_inp, (B, T, front_dim), jnp.float32)
    video_input_lengths = jnp.array([8, 5], jnp.int32)

    raw_params = init_params(k_par, front_dim, d_model, n_head, ff_dim, n_layer)
    prepared = prepare_params(raw_params)       # one-time fusion / bf16 cast / BN fold

    outputs, out_lens = visual_conformer_encoder(
        prepared, video_inputs, video_input_lengths, n_head
    )
    jax.block_until_ready(outputs)
    assert outputs.shape == (B, T, d_model)
    assert outputs.dtype == jnp.float32
    assert bool(jnp.all(jnp.isfinite(outputs)))
    print("KERNEL_OK")
</pallas_src>

<mosaic_0001>
module attributes {stable_mosaic.version = 11 : i64} {
  func.func @_probe_copy_kernel(%arg0: i32, %arg1: memref<8x128xf32, #tpu.memory_space<vmem>>, %arg2: memref<8x128xf32, #tpu.memory_space<vmem>>) attributes {dimension_semantics = [#tpu.dimension_semantics<arbitrary>], iteration_bounds = array<i64: 1>, scalar_prefetch = 0 : i64, scratch_operands = 0 : i64, tpu.core_type = #tpu.core_type<tc>, window_params = [{pipeline_mode = #tpu.pipeline_mode<synchronous>, transform_indices = @transform_0, window_bounds = array<i64: 8, 128>}, {transform_indices = @transform_1, window_bounds = array<i64: 8, 128>}]} {
    %c0 = arith.constant 0 : index
    %c0_0 = arith.constant 0 : index
    %0 = vector.load %arg1[%c0, %c0_0] : memref<8x128xf32, #tpu.memory_space<vmem>>, vector<8x128xf32>
    %c0_1 = arith.constant 0 : index
    %c0_2 = arith.constant 0 : index
    %1 = vector.load %arg2[%c0_1, %c0_2] : memref<8x128xf32, #tpu.memory_space<vmem>>, vector<8x128xf32>
    tpu.vector_store %arg2[%c0_1, %c0_2], %0 {strides = array<i32>} : memref<8x128xf32, #tpu.memory_space<vmem>>, vector<8x128xf32>,
    return
  }
  func.func @transform_0(%arg0: i32) -> (i32, i32) {
    %c0_i32 = arith.constant 0 : i32
    %c0_i32_0 = arith.constant 0 : i32
    %c0_i32_1 = arith.constant 0 : i32
    return %c0_i32, %c0_i32_0 : i32, i32
  }
  func.func @transform_1(%arg0: i32) -> (i32, i32) {
    %c0_i32 = arith.constant 0 : i32
    %c0_i32_0 = arith.constant 0 : i32
    return %arg0, %c0_i32 : i32, i32
  }
}

module attributes {stable_mosaic.version = 11 : i64} {
  func.func @_proj_kernel(%arg0: i32, %arg1: memref<16x32xf32, #tpu.memory_space<vmem>>, %arg2: memref<32x32xbf16, #tpu.memory_space<vmem>>, %arg3: memref<1x32xf32, #tpu.memory_space<vmem>>, %arg4: memref<16x32xbf16, #tpu.memory_space<vmem>>) attributes {dimension_semantics = [#tpu.dimension_semantics<parallel>], iteration_bounds = array<i64: 1>, scalar_prefetch = 0 : i64, scratch_operands = 0 : i64, tpu.core_type = #tpu.core_type<tc>, window_params = [{transform_indices = @transform_0, window_bounds = array<i64: 16, 32>}, {pipeline_mode = #tpu.pipeline_mode<synchronous>, transform_indices = @transform_1, window_bounds = array<i64: 32, 32>}, {pipeline_mode = #tpu.pipeline_mode<synchronous>, transform_indices = @transform_2, window_bounds = array<i64: 1, 32>}, {transform_indices = @transform_3, window_bounds = array<i64: 16, 32>}]} {
    %c0 = arith.constant 0 : index
    %c0_0 = arith.constant 0 : index
    %0 = vector.load %arg1[%c0, %c0_0] : memref<16x32xf32, #tpu.memory_space<vmem>>, vector<16x32xf32>
    %1 = arith.truncf %0 : vector<16x32xf32> to vector<16x32xbf16>
    %c0_1 = arith.constant 0 : index
    %c0_2 = arith.constant 0 : index
    %2 = vector.load %arg2[%c0_1, %c0_2] : memref<32x32xbf16, #tpu.memory_space<vmem>>, vector<32x32xbf16>
    %cst = arith.constant dense<0.000000e+00> : vector<16x32xf32>
    %3 = tpu.matmul %1, %2, %cst {dimension_numbers = #tpu.dot_dimension_numbers<[1], [0], [0], [1], [0, 0, 1, 1], [], []>} : vector<16x32xbf16>, vector<32x32xbf16>, vector<16x32xf32> -> vector<16x32xf32>
    %c0_3 = arith.constant 0 : index
    %c0_4 = arith.constant 0 : index
    %4 = vector.load %arg3[%c0_3, %c0_4] : memref<1x32xf32, #tpu.memory_space<vmem>>, vector<1x32xf32>
    %5 = vector.broadcast %4 : vector<1x32xf32> to vector<16x32xf32>
    %6 = arith.addf %3, %5 : vector<16x32xf32>
    %7 = arith.truncf %6 : vector<16x32xf32> to vector<16x32xbf16>
    %c0_5 = arith.constant 0 : index
    %c0_6 = arith.constant 0 : index
    %8 = vector.load %arg4[%c0_5, %c0_6] : memref<16x32xbf16, #tpu.memory_space<vmem>>, vector<16x32xbf16>
    tpu.vector_store %arg4[%c0_5, %c0_6], %7 {strides = array<i32>} : memref<16x32xbf16, #tpu.memory_space<vmem>>, vector<16x32xbf16>,
    return
  }
  func.func @transform_0(%arg0: i32) -> (i32, i32) {
    %c0_i32 = arith.constant 0 : i32
    %c0_i32_0 = arith.constant 0 : i32
    return %arg0, %c0_i32 : i32, i32
  }
  func.func @transform_1(%arg0: i32) -> (i32, i32) {
    %c0_i32 = arith.constant 0 : i32
    %c0_i32_0 = arith.constant 0 : i32
    %c0_i32_1 = arith.constant 0 : i32
    return %c0_i32, %c0_i32_0 : i32, i32
  }
  func.func @transform_2(%arg0: i32) -> (i32, i32) {
    %c0_i32 = arith.constant 0 : i32
    %c0_i32_0 = arith.constant 0 : i32
    %c0_i32_1 = arith.constant 0 : i32
    return %c0_i32, %c0_i32_0 : i32, i32
  }
  func.func @transform_3(%arg0: i32) -> (i32, i32) {
    %c0_i32 = arith.constant 0 : i32
    %c0_i32_0 = arith.constant 0 : i32
    return %arg0, %c0_i32 : i32, i32
  }
}

</mosaic_0001>

<llo_original>
// kernel: tpu_custom_call.1
$region0: #{tpu_custom_call.1}
  #allocation0 [shape = 'u32[]', space=smem, size = 0x4, offset = 0x4, fixed_abs, tag = 'smem constant byte address 0x4 - core index']
  #allocation1 [shape = 'u32[144,128]{1,0:T(1,128)}', space=vmem, size = 0x12000, scoped, tag = 'internal scratch']
  %s0 = inlined_call_operand.hbm [shape: f32[8,128], index: 0, kind: input, shape index: {}]
  %s1 = inlined_call_operand.hbm [shape: f32[8,128], index: 1, kind: output, shape index: {}]
  %s2 = sld [smem:[#allocation0]]
  $region18: #{tpu_custom_call.1} parent=0
    _
  %s4 = ssub.s32 1, %s2
  %s5 = scalar_select 0, %s4, %s2
  $region1: #{tpu_custom_call.1} parent=0
    #allocation2 [shape = 'u8[4096]{0}', space=vmem, size = 0x1000, scoped, tag = 'input window, operand 0, single buffered']
    #allocation3 [shape = 's32[1]{0}', space=sflag, size = 0x4, scoped, tag = 'scoped memory for tpu_custom_call.1']
    #allocation4 [shape = 's32[1]{0}', space=sflag, size = 0x4, scoped, tag = 'scoped memory for tpu_custom_call.1']
    #allocation5 [shape = 'u8[4096]{0}', space=vmem, size = 0x1000, scoped, tag = 'output window, operand 0, single buffered']
    %6 = vsyncpa [#allocation3], 0
    %7 = vsyncpa [#allocation4], 0
    // Predicated region
    $region2: #{tpu_custom_call.1} parent=1 // pred_check
      _
    $region3: #{tpu_custom_call.1} parent=1 // pred_check_branch
      %9 = sbr.rel (0) target = $region5
    $region4: #{tpu_custom_call.1} parent=1 // pred_region
      %s11 = ssub.s32 128, 128
      %12 = vsyncadd [#allocation3], %s11
      %s14 = sshll.u32 [#allocation2], 4
      %s15 = int_to_ptr.vmem [resolvable:$true] %s14
      %17 = dma.hbm_to_vmem [thread:$0]  %s0, 128, %s15, [#allocation3]
    $region5: #{tpu_custom_call.1} parent=1 // pred_fallthru
      _
    // Predicated region
    $region6: #{tpu_custom_call.1} parent=1 // pred_check
      _
    $region7: #{tpu_custom_call.1} parent=1 // pred_check_branch
      %19 = sbr.rel (0) target = $region9
    $region8: #{tpu_custom_call.1} parent=1 // pred_region
      %20 = dma.done [#allocation3], 128
    $region9: #{tpu_custom_call.1} parent=1 // pred_fallthru
      _
    %v21 = vld [vmem:[#allocation2] sm:$0xff]
    %22 = vst [vmem:[#allocation5] sm:$0xff] %v21
    // Predicated region
    $region10: #{tpu_custom_call.1} parent=1 // pred_check
      _
    $region11: #{tpu_custom_call.1} parent=1 // pred_check_branch
      %24 = sbr.rel (0) target = $region13
    $region12: #{tpu_custom_call.1} parent=1 // pred_region
      %s26 = ssub.s32 128, 128
      %27 = vsyncadd [#allocation4], %s26
      %s29 = sshll.u32 [#allocation5], 4
      %s30 = int_to_ptr.vmem [resolvable:$true] %s29
      %32 = dma.vmem_to_hbm [thread:$0]  %s30, 128, %s1, [#allocation4]
    $region13: #{tpu_custom_call.1} parent=1 // pred_fallthru
      _
    // Predicated region
    $region14: #{tpu_custom_call.1} parent=1 // pred_check
      _
    $region15: #{tpu_custom_call.1} parent=1 // pred_check_branch
      %34 = sbr.rel (0) target = $region17
    $region16: #{tpu_custom_call.1} parent=1 // pred_region
      %35 = dma.done [#allocation4], 128
    $region17: #{tpu_custom_call.1} parent=1 // pred_fallthru
      _
    %36 = vsyncpa [#allocation3], 1
    %37 = vsyncpa [#allocation4], 1

// kernel: tpu_custom_call.1
$region0: #{tpu_custom_call.1}
  #allocation0 [shape = 'u32[]', space=smem, size = 0x4, offset = 0x4, fixed_abs, tag = 'smem constant byte address 0x4 - core index']
  #allocation1 [shape = 'u32[144,128]{1,0:T(1,128)}', space=vmem, size = 0x12000, scoped, tag = 'internal scratch']
  %s0 = inlined_call_operand.hbm [shape: f32[16,32], index: 0, kind: input, shape index: {}]
  %s1 = inlined_call_operand.hbm [shape: bf16[32,32], index: 1, kind: input, shape index: {}]
  %s2 = inlined_call_operand.hbm [shape: f32[1,32], index: 2, kind: input, shape index: {}]
  %s3 = inlined_call_operand.hbm [shape: bf16[16,32], index: 3, kind: output, shape index: {}]
  %s4 = sld [smem:[#allocation0]]
  $region34: #{tpu_custom_call.1} parent=0
    _
  %s6 = ssub.s32 1, %s4
  %s7 = scalar_select 0, %s6, %s4
  $region1: #{tpu_custom_call.1} parent=0
    #allocation2 [shape = 'u8[8192]{0}', space=vmem, size = 0x2000, scoped, tag = 'input window, operand 0, single buffered']
    #allocation3 [shape = 's32[1]{0}', space=sflag, size = 0x4, scoped, tag = 'scoped memory for tpu_custom_call.1']
    #allocation4 [shape = 's32[1]{0}', space=sflag, size = 0x4, scoped, tag = 'scoped memory for tpu_custom_call.1']
    #allocation5 [shape = 'u8[8192]{0}', space=vmem, size = 0x2000, scoped, tag = 'input window, operand 1, single buffered']
    #allocation6 [shape = 's32[1]{0}', space=sflag, size = 0x4, scoped, tag = 'scoped memory for tpu_custom_call.1']
    #allocation7 [shape = 'u8[512]{0}', space=vmem, size = 0x400, scoped, tag = 'input window, operand 2, single buffered']
    #allocation8 [shape = 'u8[4096]{0}', space=vmem, size = 0x1000, scoped, tag = 'output window, operand 0, single buffered']
    %8 = vsyncpa [#allocation3], 0
    %9 = vsyncpa [#allocation6], 0
    %10 = vsyncpa [#allocation4], 0
    // Predicated region
    $region2: #{tpu_custom_call.1} parent=1 // pred_check
      _
    $region3: #{tpu_custom_call.1} parent=1 // pred_check_branch
      %12 = sbr.rel (0) target = $region5
    $region4: #{tpu_custom_call.1} parent=1 // pred_region
      %s14 = ssub.s32 256, 256
      %15 = vsyncadd [#allocation3], %s14
      %s16 = sshll.u32 [#allocation2], 4
      %s17 = int_to_ptr.vmem [resolvable:$true] %s16
      %22 = dma.hbm_to_vmem [thread:$0]  %s0, 256, %s17, [#allocation3], 128, 128, 8
    $region5: #{tpu_custom_call.1} parent=1 // pred_fallthru
      _
    // Predicated region
    $region6: #{tpu_custom_call.1} parent=1 // pred_check
      _
    $region7: #{tpu_custom_call.1} parent=1 // pred_check_branch
      %24 = sbr.rel (0) target = $region9
    $region8: #{tpu_custom_call.1} parent=1 // pred_region
      %s26 = ssub.s32 256, 256
      %27 = vsyncadd [#allocation6], %s26
      %s28 = sshll.u32 [#allocation5], 4
      %s29 = int_to_ptr.vmem [resolvable:$true] %s28
      %34 = dma.hbm_to_vmem [thread:$0]  %s1, 256, %s29, [#allocation6], 64, 64, 4
    $region9: #{tpu_custom_call.1} parent=1 // pred_fallthru
      _
    // Predicated region
    $region10: #{tpu_custom_call.1} parent=1 // pred_check
      _
    $region11: #{tpu_custom_call.1} parent=1 // pred_check_branch
      %36 = sbr.rel (0) target = $region13
    $region12: #{tpu_custom_call.1} parent=1 // pred_region
      %s38 = ssub.s32 16, 16
      %39 = vsyncadd [#allocation6], %s38
      %s41 = sshll.u32 [#allocation7], 4
      %s42 = int_to_ptr.vmem [resolvable:$true] %s41
      %44 = dma.hbm_to_vmem [thread:$0]  %s2, 16, %s42, [#allocation6]
    $region13: #{tpu_custom_call.1} parent=1 // pred_fallthru
      _
    // Predicated region
    $region14: #{tpu_custom_call.1} parent=1 // pred_check
      _
    $region15: #{tpu_custom_call.1} parent=1 // pred_check_branch
      %46 = sbr.rel (0) target = $region17
    $region16: #{tpu_custom_call.1} parent=1 // pred_region
      %47 = dma.done [#allocation3], 256
    $region17: #{tpu_custom_call.1} parent=1 // pred_fallthru
      _
    // Predicated region
    $region18: #{tpu_custom_call.1} parent=1 // pred_check
      _
    $region19: #{tpu_custom_call.1} parent=1 // pred_check_branch
      %49 = sbr.rel (0) target = $region21
    $region20: #{tpu_custom_call.1} parent=1 // pred_region
      %50 = dma.done [#allocation6], 256
    $region21: #{tpu_custom_call.1} parent=1 // pred_fallthru
      _
    // Predicated region
    $region22: #{tpu_custom_call.1} parent=1 // pred_check
      _
    $region23: #{tpu_custom_call.1} parent=1 // pred_check_branch
      %52 = sbr.rel (0) target = $region25
    $region24: #{tpu_custom_call.1} parent=1 // pred_region
      %53 = dma.done [#allocation6], 16
    $region25: #{tpu_custom_call.1} parent=1 // pred_fallthru
      _
    %v55 = vld [vmem:[#allocation2] sm:$0xff]
    %v56 = vld [vmem:[#allocation2 + $0x8] sm:$0xff]
    %v57 = vpack.c.bf16 %v56, %v55
    %v58 = vld [vmem:[#allocation5] sm:$0xf]
    %v59 = vld [vmem:[#allocation5 + $0x4] sm:$0xf]
    %v60 = vld [vmem:[#allocation5 + $0x8] sm:$0xf]
    %v61 = vld [vmem:[#allocation5 + $0xc] sm:$0xf]
    %v62 = vld [vmem:[#allocation7] sm:$0x1]
    %v64 = vlaneseq
    %v65 = vshrl.u32 %v64, 7
    %v66 = vsub.s32 0, %v65
    %v67 = vrot.slane %v62, %v66
    %v73 = vunpack.c.l.b16 %v58
    %v74 = vunpack.c.l.b16 %v59
    %v75 = vunpack.c.l.b16 %v60
    %v76 = vunpack.c.l.b16 %v61
    %v77 = vpack.c.b16 %v74, %v73
    %v78 = vpack.c.b16 %v76, %v75
    %vm81 = vcmask 261120
    %v83 = vsel %vm81, %v57, 0
    %85 = vmatprep.subr.bf16.mxu0 0
    %86 = vmatpush1.bf16.msra.mxu0 %v77
    %87 = vmatprep.subr.bf16.mxu0 0
    %88 = vmatpush1.bf16.msra.mxu0 %v78
    %89 = vmatprep.subr.bf16.mxu0 0
    %90 = vmatpush1.bf16.msra.mxu0 0
    %91 = vmatprep.subr.bf16.mxu0 0
    %92 = vmatpush1.bf16.msra.mxu0 0
    %93 = vmatprep.subr.bf16.mxu0 0
    %94 = vmatpush1.bf16.msra.mxu0 0
    %95 = vmatprep.subr.bf16.mxu0 0
    %96 = vmatpush1.bf16.msra.mxu0 0
    %97 = vmatprep.subr.bf16.mxu0 0
    %98 = vmatpush1.bf16.msra.mxu0 0
    %99 = vmatprep.subr.bf16.mxu0 0
    %100 = vmatpush1.bf16.msra.mxu0 0
    %101 = vmatprep.subr.bf16.mxu0 0
    %102 = vmatpush1.bf16.msra.mxu0 0
    %103 = vmatprep.subr.bf16.mxu0 0
    %104 = vmatpush1.bf16.msra.mxu0 0
    %105 = vmatprep.subr.bf16.mxu0 0
    %106 = vmatpush1.bf16.msra.mxu0 0
    %107 = vmatprep.subr.bf16.mxu0 0
    %108 = vmatpush1.bf16.msra.mxu0 0
    %109 = vmatprep.subr.bf16.mxu0 0
    %110 = vmatpush1.bf16.msra.mxu0 0
    %111 = vmatprep.subr.bf16.mxu0 0
    %112 = vmatpush1.bf16.msra.mxu0 0
    %113 = vmatprep.subr.bf16.mxu0 0
    %114 = vmatpush1.bf16.msra.mxu0 0
    %115 = vmatprep.subr.bf16.mxu0 0
    %116 = vmatpush1.bf16.msra.mxu0 0
    %117 = vmatprep.mubr.bf16.mxu0 0
    %118 = vmatmul.mubr.bf16.gmra.mrb[0].mxu0 %v83
    %v119 = vpop.f32.mrb[0].mxu0
    %v120 = vadd.f32 %v67, %v119
    %v121 = vpop.f32.mrb[0].mxu0
    %v122 = vpop.f32.mrb[0].mxu0
    %v123 = vadd.f32 %v67, %v122
    %v124 = vpop.f32.mrb[0].mxu0
    %125 = vdwg.mxu0
    %v126 = vpack.c.bf16 %v123, %v120
    %v128 = vunpack.c.l.b16 %v126
    %v129 = vunpack.c.h.b16 %v126
    %v130 = vpack.c.b16 %v128, %v128
    %v131 = vpack.c.b16 %v129, %v129
    %vm134 = vcmask 257024
    %135 = vst.msk [vmem:[#allocation8] sm:$0xf] %vm134, %v130
    %136 = vst.msk [vmem:[#allocation8 + $0x4] sm:$0xf] %vm134, %v131
    // Predicated region
    $region26: #{tpu_custom_call.1} parent=1 // pred_check
      _
    $region27: #{tpu_custom_call.1} parent=1 // pred_check_branch
      %138 = sbr.rel (0) target = $region29
    $region28: #{tpu_custom_call.1} parent=1 // pred_region
      %s140 = ssub.s32 128, 128
      %141 = vsyncadd [#allocation4], %s140
      %s142 = sshll.u32 [#allocation8], 4
      %s143 = int_to_ptr.vmem [resolvable:$true] %s142
      %148 = dma.vmem_to_hbm [thread:$0]  %s143, 128, %s3, [#allocation4], 64, 64, 4
    $region29: #{tpu_custom_call.1} parent=1 // pred_fallthru
      _
    // Predicated region
    $region30: #{tpu_custom_call.1} parent=1 // pred_check
      _
    $region31: #{tpu_custom_call.1} parent=1 // pred_check_branch
      %150 = sbr.rel (0) target = $region33
    $region32: #{tpu_custom_call.1} parent=1 // pred_region
      %151 = dma.done [#allocation4], 128
    $region33: #{tpu_custom_call.1} parent=1 // pred_fallthru
      _
    %152 = vsyncpa [#allocation3], 1
    %153 = vsyncpa [#allocation6], 1
    %154 = vsyncpa [#allocation4], 1

</llo_original>
